<compile_context>
chip_gen: v7x
topology: tpu7x:2x2x1
jax: 0.10.0
libtpu: 0.0.40
codegen_flags: <defaults>
</compile_context>

<pallas_src>
import functools

import jax
import jax.numpy as jnp
from jax.experimental import pallas as pl
from jax.experimental.pallas import tpu as pltpu

LANE = 128       # vreg lane width (last dim)
ACC_ROWS = 8     # fixed (8, 128) f32 accumulator tile (one vreg)


def _round_up(x, m):
    return (x + m - 1) // m * m


def _sublane_pack(dtype):
    """Minimum sublane multiple for clean packed-tile blocks of this dtype."""
    itemsize = jnp.dtype(dtype).itemsize
    return max(8, 32 // max(1, itemsize))   # f32 -> 8, bf16/f16 -> 16, int8/fp8 -> 32


def _vmem_capacity_bytes():
    """Physical VMEM per TensorCore; used to pick generation-aware tiling."""
    try:
        cap = getattr(pltpu.get_tpu_info(), "vmem_capacity_bytes", None)
        if cap:
            return int(cap)
    except Exception:
        pass
    return 64 * 1024 * 1024   # conservative fallback (v7x per-core VMEM)


def _rmse_partial_kernel(yhat_ref, y_ref, out_ref, *,
                         valid_rows, block_rows, blocks_per_core, needs_mask):
    c = pl.program_id(0)        # partial-output slot (TensorCore on v7x)
    i = pl.program_id(1)        # row-block step within this slot (reduction axis)

    # Zero this slot's resident (8,128) partial-sum block on its first step.
    @pl.when(i == 0)
    def _():
        out_ref[...] = jnp.zeros_like(out_ref)

    # Squared difference in f32 (native-dtype inputs cast per block in-kernel).
    d = yhat_ref[...].astype(jnp.float32) - y_ref[...].astype(jnp.float32)
    sq = d * d

    def accum(x):
        # Fold (tm, 128) -> (8, 128): layout-preserving reshape + per-vreg VALU
        # adds (no cross-lane work), hidden under the input HBM DMA.
        out_ref[...] += x.reshape(-1, ACC_ROWS, LANE).sum(axis=0)

    if needs_mask:
        blk = c * blocks_per_core + i            # logical (unclamped) row block
        row0 = blk * block_rows

        # Steady state: fully-valid block, no masking work at all.
        @pl.when(row0 + block_rows <= valid_rows)
        def _():
            accum(sq)

        # Cold path: the (at most one per slot) partial / overhang block.
        @pl.when(row0 + block_rows > valid_rows)
        def _():
            rows = jax.lax.broadcasted_iota(jnp.int32, sq.shape, 0) + row0
            accum(jnp.where(rows < valid_rows, sq, 0.0))
    else:
        accum(sq)


def rmse_loss(yhat, y, eps=0.0, *, max_block_rows=None):
    """sqrt(sum((yhat - y)**2) + eps)  — matches torch RMSELoss with MSELoss(reduction='sum')."""
    assert yhat.shape == y.shape, "yhat and y must have the same shape"

    yh = yhat.reshape(-1)    # free reshape, native dtype stays in HBM
    yy = y.reshape(-1)
    total = int(yh.shape[0])
    n_main = (total // LANE) * LANE

    # Lane tail (< 128 trailing elements): tiny, handled in plain JAX and folded
    # into the final scalar.  Rare path (only when numel % 128 != 0).
    if n_main < total:
        dt = yh[n_main:].astype(jnp.float32) - yy[n_main:].astype(jnp.float32)
        tail = jnp.sum(dt * dt)
    else:
        tail = jnp.float32(0.0)

    if n_main == 0:
        # Degenerate tiny input: nothing for the kernel to do.
        return jnp.sqrt(tail + jnp.float32(eps))

    if n_main < total:
        # TODO(synk): this slice feeding pallas_call may materialize a copy on
        # the rare numel % 128 != 0 path; acceptable (verify in HLO if it matters).
        yh_m, yy_m = yh[:n_main], yy[:n_main]
    else:
        yh_m, yy_m = yh, yy

    m = n_main // LANE
    yh2 = yh_m.reshape(m, LANE)      # no-copy reshape of flat array
    yy2 = yy_m.reshape(m, LANE)

    # ---- Generation-aware tile + VMEM budget --------------------------------
    pack = max(_sublane_pack(yh2.dtype), _sublane_pack(yy2.dtype))
    itemsize = max(jnp.dtype(yh2.dtype).itemsize, jnp.dtype(yy2.dtype).itemsize)
    if _vmem_capacity_bytes() <= 64 * 1024 * 1024:
        # v7x-class (64 MiB/core): 8 MiB input blocks -> 32 MiB double-buffered.
        blk_bytes, vmem_limit = 8 * 1024 * 1024, 44 * 1024 * 1024
    else:
        # v5e / v6e (128 MiB): 4 MiB input blocks -> 16 MiB of input buffering.
        blk_bytes, vmem_limit = 4 * 1024 * 1024, 32 * 1024 * 1024

    tm_cap = blk_bytes // (LANE * itemsize)
    if max_block_rows is not None:
        tm_cap = min(tm_cap, int(max_block_rows))
    tm_cap = max(pack, tm_cap // pack * pack)           # dtype-packing aligned
    tm = min(tm_cap, _round_up(m, pack))
    nb = -(-m // tm)                                     # number of row blocks

    # ---- 2-TensorCore split (v7x megacore; harmless no-op on 1-TC chips) ----
    nc = 2 if nb >= 2 else 1
    nb_per = -(-nb // nc)                                # row blocks per slot
    needs_mask = (nc * nb_per * tm) != m                 # any partial/overhang?

    def in_map(c, i):
        # Clamp so the (at most one) overhang block of an odd split DMAs valid
        # data; its contribution is zeroed by the in-kernel row mask.
        return (jnp.minimum(c * nb_per + i, nb - 1), 0)

    kernel = functools.partial(
        _rmse_partial_kernel, valid_rows=m, block_rows=tm,
        blocks_per_core=nb_per, needs_mask=needs_mask)

    partials = pl.pallas_call(
        kernel,
        out_shape=jax.ShapeDtypeStruct((nc * ACC_ROWS, LANE), jnp.float32),
        grid_spec=pltpu.PrefetchScalarGridSpec(
            num_scalar_prefetch=0,
            grid=(nc, nb_per),                            # reduction axis last
            in_specs=[
                pl.BlockSpec((tm, LANE), in_map),         # yhat rows
                pl.BlockSpec((tm, LANE), in_map),         # y rows
            ],
            # Same block across the reduction axis -> resident accumulator slot.
            out_specs=pl.BlockSpec((ACC_ROWS, LANE), lambda c, i: (c, 0)),
        ),
        compiler_params=pltpu.CompilerParams(
            dimension_semantics=("parallel", "arbitrary"),
            vmem_limit_bytes=vmem_limit),
    )(yh2, yy2)

    # Tiny epilogue in plain JAX: combine per-core partials + lane tail + eps.
    return jnp.sqrt(jnp.sum(partials, dtype=jnp.float32) + tail + jnp.float32(eps))


if __name__ == "__main__":
    key = jax.random.PRNGKey(0)
    k1, k2, k3, k4 = jax.random.split(key, 4)

    # Primary: NCHW conv-style output, [2, 4, 16, 16], f32.
    yhat = jax.random.normal(k1, (2, 4, 16, 16), dtype=jnp.float32)
    y = jax.random.normal(k2, (2, 4, 16, 16), dtype=jnp.float32)
    loss = jax.block_until_ready(rmse_loss(yhat, y, eps=0.0))
    ref = jnp.sqrt(jnp.sum((yhat - y) ** 2) + 0.0)
    assert jnp.allclose(loss, ref, rtol=1e-5, atol=1e-5), (loss, ref)

    # Native-dtype streaming path: bf16 inputs, in-kernel f32 accumulation.
    yhat_bf, y_bf = yhat.astype(jnp.bfloat16), y.astype(jnp.bfloat16)
    loss_bf = jax.block_until_ready(rmse_loss(yhat_bf, y_bf, eps=0.0))
    ref_bf = jnp.sqrt(jnp.sum(
        (yhat_bf.astype(jnp.float32) - y_bf.astype(jnp.float32)) ** 2))
    assert jnp.allclose(loss_bf, ref_bf, rtol=1e-4, atol=1e-4), (loss_bf, ref_bf)

    # Stress the multi-block / two-partial-slot / ragged-row / lane-tail /
    # clamped-overhang paths by forcing a small block size (nb=3 over 2 slots).
    n = 640 * 128 + 37
    a = jax.random.normal(k3, (n,), dtype=jnp.float32)
    b = jax.random.normal(k4, (n,), dtype=jnp.float32)
    loss3 = jax.block_until_ready(rmse_loss(a, b, eps=1e-6, max_block_rows=256))
    ref3 = jnp.sqrt(jnp.sum((a - b) ** 2) + 1e-6)
    assert jnp.allclose(loss3, ref3, rtol=1e-4, atol=1e-4), (loss3, ref3)

    print("KERNEL_OK")
</pallas_src>

<mosaic_0001>
module attributes {stable_mosaic.version = 11 : i64} {
  func.func @_rmse_partial_kernel(%arg0: i32, %arg1: i32, %arg2: memref<16x128xf32, #tpu.memory_space<vmem>>, %arg3: memref<16x128xf32, #tpu.memory_space<vmem>>, %arg4: memref<8x128xf32, #tpu.memory_space<vmem>>) attributes {dimension_semantics = [#tpu.dimension_semantics<parallel>, #tpu.dimension_semantics<arbitrary>], iteration_bounds = array<i64: 1, 1>, scalar_prefetch = 0 : i64, scratch_operands = 0 : i64, tpu.core_type = #tpu.core_type<tc>, window_params = [{transform_indices = @transform_0, window_bounds = array<i64: 16, 128>}, {transform_indices = @transform_1, window_bounds = array<i64: 16, 128>}, {transform_indices = @transform_2, window_bounds = array<i64: 8, 128>}]} {
    %c0_i32 = arith.constant 0 : i32
    %0 = arith.cmpi eq, %arg1, %c0_i32 : i32
    %1 = arith.extui %0 : i1 to i32
    %c0_i32_0 = arith.constant 0 : i32
    %2 = arith.cmpi ne, %1, %c0_i32_0 : i32
    scf.if %2 {
      %cst_8 = arith.constant 0.000000e+00 : f32
      %12 = vector.broadcast %cst_8 : f32 to vector<8x128xf32>
      %c0_9 = arith.constant 0 : index
      %c0_10 = arith.constant 0 : index
      %13 = vector.load %arg4[%c0_9, %c0_10] : memref<8x128xf32, #tpu.memory_space<vmem>>, vector<8x128xf32>
      tpu.vector_store %arg4[%c0_9, %c0_10], %12 {strides = array<i32>} : memref<8x128xf32, #tpu.memory_space<vmem>>, vector<8x128xf32>,
    } else {
    }
    %c0 = arith.constant 0 : index
    %c0_1 = arith.constant 0 : index
    %3 = vector.load %arg2[%c0, %c0_1] : memref<16x128xf32, #tpu.memory_space<vmem>>, vector<16x128xf32>
    %c0_2 = arith.constant 0 : index
    %c0_3 = arith.constant 0 : index
    %4 = vector.load %arg3[%c0_2, %c0_3] : memref<16x128xf32, #tpu.memory_space<vmem>>, vector<16x128xf32>
    %5 = arith.subf %3, %4 : vector<16x128xf32>
    %6 = arith.mulf %5, %5 : vector<16x128xf32>
    %c0_4 = arith.constant 0 : index
    %c0_5 = arith.constant 0 : index
    %7 = vector.load %arg4[%c0_4, %c0_5] : memref<8x128xf32, #tpu.memory_space<vmem>>, vector<8x128xf32>
    %8 = vector.shape_cast %6 : vector<16x128xf32> to vector<2x8x128xf32>
    %cst = arith.constant dense<0.000000e+00> : vector<8x128xf32>
    %9 = vector.multi_reduction <add>, %8, %cst [0] : vector<2x8x128xf32> to vector<8x128xf32>
    %10 = arith.addf %7, %9 : vector<8x128xf32>
    %c0_6 = arith.constant 0 : index
    %c0_7 = arith.constant 0 : index
    %11 = vector.load %arg4[%c0_6, %c0_7] : memref<8x128xf32, #tpu.memory_space<vmem>>, vector<8x128xf32>
    tpu.vector_store %arg4[%c0_6, %c0_7], %10 {strides = array<i32>} : memref<8x128xf32, #tpu.memory_space<vmem>>, vector<8x128xf32>,
    return
  }
  func.func @transform_0(%arg0: i32, %arg1: i32) -> (i32, i32) {
    %c1_i32 = arith.constant 1 : i32
    %0 = arith.muli %arg0, %c1_i32 : i32
    %1 = arith.addi %0, %arg1 : i32
    %c0_i32 = arith.constant 0 : i32
    %2 = arith.minsi %1, %c0_i32 : i32
    %c0_i32_0 = arith.constant 0 : i32
    %c0_i32_1 = arith.constant 0 : i32
    return %2, %c0_i32_0 : i32, i32
  }
  func.func @transform_1(%arg0: i32, %arg1: i32) -> (i32, i32) {
    %c1_i32 = arith.constant 1 : i32
    %0 = arith.muli %arg0, %c1_i32 : i32
    %1 = arith.addi %0, %arg1 : i32
    %c0_i32 = arith.constant 0 : i32
    %2 = arith.minsi %1, %c0_i32 : i32
    %c0_i32_0 = arith.constant 0 : i32
    %c0_i32_1 = arith.constant 0 : i32
    return %2, %c0_i32_0 : i32, i32
  }
  func.func @transform_2(%arg0: i32, %arg1: i32) -> (i32, i32) {
    %c0_i32 = arith.constant 0 : i32
    %c0_i32_0 = arith.constant 0 : i32
    return %arg0, %c0_i32 : i32, i32
  }
}

</mosaic_0001>

<llo_original>
// kernel: tpu_custom_call.1
$region0: #{tpu_custom_call.1}
  #allocation0 [shape = 'u32[]', space=smem, size = 0x4, offset = 0x4, fixed_abs, tag = 'smem constant byte address 0x4 - core index']
  #allocation1 [shape = 'u32[144,128]{1,0:T(1,128)}', space=vmem, size = 0x12000, scoped, tag = 'internal scratch']
  %s0 = inlined_call_operand.hbm [shape: f32[16,128], index: 0, kind: input, shape index: {}]
  %s1 = inlined_call_operand.hbm [shape: f32[16,128], index: 1, kind: input, shape index: {}]
  %s2 = inlined_call_operand.hbm [shape: f32[8,128], index: 2, kind: output, shape index: {}]
  %s3 = sld [smem:[#allocation0]]
  $region30: #{tpu_custom_call.1} parent=0
    _
  %s5 = ssub.s32 1, %s3
  %s6 = scalar_select 0, %s5, %s3
  $region1: #{tpu_custom_call.1} parent=0
    #allocation2 [shape = 'u8[8192]{0}', space=vmem, size = 0x2000, scoped, tag = 'input window, operand 0, single buffered']
    #allocation3 [shape = 's32[1]{0}', space=sflag, size = 0x4, scoped, tag = 'scoped memory for tpu_custom_call.1']
    #allocation4 [shape = 's32[1]{0}', space=sflag, size = 0x4, scoped, tag = 'scoped memory for tpu_custom_call.1']
    #allocation5 [shape = 'u8[8192]{0}', space=vmem, size = 0x2000, scoped, tag = 'input window, operand 1, single buffered']
    #allocation6 [shape = 's32[1]{0}', space=sflag, size = 0x4, scoped, tag = 'scoped memory for tpu_custom_call.1']
    #allocation7 [shape = 'u8[4096]{0}', space=vmem, size = 0x1000, scoped, tag = 'output window, operand 0, single buffered']
    %7 = vsyncpa [#allocation3], 0
    %8 = vsyncpa [#allocation6], 0
    %9 = vsyncpa [#allocation4], 0
    // Predicated region
    $region2: #{tpu_custom_call.1} parent=1 // pred_check
      _
    $region3: #{tpu_custom_call.1} parent=1 // pred_check_branch
      %11 = sbr.rel (0) target = $region5
    $region4: #{tpu_custom_call.1} parent=1 // pred_region
      %s12 = sadd.s32 0, 0
      %p13 = scmp.lt.s32.totalorder %s12, 0
      %s14 = scalar_select %p13, %s12, 0
      %s15 = smul.u32 2, %s14
      %s17 = ssub.s32 256, 256
      %18 = vsyncadd [#allocation3], %s17
      %s19 = smul.addr %s15, 128
      %s20 = scalar_lea.hbm %s0, %s19
      %s21 = sshll.u32 [#allocation2], 4
      %s22 = int_to_ptr.vmem [resolvable:$true] %s21
      %27 = dma.hbm_to_vmem [thread:$0]  %s20, 256, %s22, [#allocation3], 128, 128, 8
    $region5: #{tpu_custom_call.1} parent=1 // pred_fallthru
      _
    // Predicated region
    $region6: #{tpu_custom_call.1} parent=1 // pred_check
      _
    $region7: #{tpu_custom_call.1} parent=1 // pred_check_branch
      %29 = sbr.rel (0) target = $region9
    $region8: #{tpu_custom_call.1} parent=1 // pred_region
      %s30 = sadd.s32 0, 0
      %p31 = scmp.lt.s32.totalorder %s30, 0
      %s32 = scalar_select %p31, %s30, 0
      %s33 = smul.u32 2, %s32
      %s35 = ssub.s32 256, 256
      %36 = vsyncadd [#allocation6], %s35
      %s37 = smul.addr %s33, 128
      %s38 = scalar_lea.hbm %s1, %s37
      %s39 = sshll.u32 [#allocation5], 4
      %s40 = int_to_ptr.vmem [resolvable:$true] %s39
      %45 = dma.hbm_to_vmem [thread:$0]  %s38, 256, %s40, [#allocation6], 128, 128, 8
    $region9: #{tpu_custom_call.1} parent=1 // pred_fallthru
      _
    // Predicated region
    $region10: #{tpu_custom_call.1} parent=1 // pred_check
      _
    $region11: #{tpu_custom_call.1} parent=1 // pred_check_branch
      %47 = sbr.rel (0) target = $region13
    $region12: #{tpu_custom_call.1} parent=1 // pred_region
      %48 = dma.done [#allocation3], 256
    $region13: #{tpu_custom_call.1} parent=1 // pred_fallthru
      _
    // Predicated region
    $region14: #{tpu_custom_call.1} parent=1 // pred_check
      _
    $region15: #{tpu_custom_call.1} parent=1 // pred_check_branch
      %50 = sbr.rel (0) target = $region17
    $region16: #{tpu_custom_call.1} parent=1 // pred_region
      %51 = dma.done [#allocation6], 256
    $region17: #{tpu_custom_call.1} parent=1 // pred_fallthru
      _
    %s52 = sadd.s32 0, 0
    %p53 = scmp.lt.s32.totalorder %s52, 0
    %s54 = scalar_select %p53, %s52, 0
    %s55 = smul.u32 2, %s54
    %s56 = sadd.s32 0, 0
    %p57 = scmp.lt.s32.totalorder %s56, 0
    %s58 = scalar_select %p57, %s56, 0
    %s59 = smul.u32 2, %s58
    %p60 = scmp.eq.s32.totalorder 0, 0
    // Predicated region
    $region18: #{tpu_custom_call.1} parent=1 // pred_check
      %p61 = pneg %p60
    $region19: #{tpu_custom_call.1} parent=1 // pred_check_branch
      %63 = sbr.rel (%p61) target = $region21
    $region20: #{tpu_custom_call.1} parent=1 // pred_region
      %64 = vst [vmem:[#allocation7] sm:$0xff] 0.0
    $region21: #{tpu_custom_call.1} parent=1 // pred_fallthru
      _
    %v65 = vld [vmem:[#allocation2] sm:$0xff]
    %v66 = vld [vmem:[#allocation2 + $0x8] sm:$0xff]
    %v67 = vld [vmem:[#allocation5] sm:$0xff]
    %v68 = vld [vmem:[#allocation5 + $0x8] sm:$0xff]
    %v69 = vsub.f32 %v65, %v67
    %v70 = vsub.f32 %v66, %v68
    %v71 = vmul.f32 %v69, %v69
    %v72 = vmul.f32 %v70, %v70
    %v73 = vld [vmem:[#allocation7] sm:$0xff]
    %v74 = vadd.f32 %v71, %v72
    %v75 = vadd.f32 %v73, %v74
    %76 = vst [vmem:[#allocation7] sm:$0xff] %v75
    // Predicated region
    $region22: #{tpu_custom_call.1} parent=1 // pred_check
      _
    $region23: #{tpu_custom_call.1} parent=1 // pred_check_branch
      %78 = sbr.rel (0) target = $region25
    $region24: #{tpu_custom_call.1} parent=1 // pred_region
      %s80 = ssub.s32 128, 128
      %81 = vsyncadd [#allocation4], %s80
      %s83 = sshll.u32 [#allocation7], 4
      %s84 = int_to_ptr.vmem [resolvable:$true] %s83
      %86 = dma.vmem_to_hbm [thread:$0]  %s84, 128, %s2, [#allocation4]
    $region25: #{tpu_custom_call.1} parent=1 // pred_fallthru
      _
    // Predicated region
    $region26: #{tpu_custom_call.1} parent=1 // pred_check
      _
    $region27: #{tpu_custom_call.1} parent=1 // pred_check_branch
      %88 = sbr.rel (0) target = $region29
    $region28: #{tpu_custom_call.1} parent=1 // pred_region
      %89 = dma.done [#allocation4], 128
    $region29: #{tpu_custom_call.1} parent=1 // pred_fallthru
      _
    %90 = vsyncpa [#allocation3], 1
    %91 = vsyncpa [#allocation6], 1
    %92 = vsyncpa [#allocation4], 1

</llo_original>
